<compile_context>
chip_gen: v5e
topology: v5e:2x2
jax: 0.10.0
libtpu: 0.0.40
codegen_flags: <defaults>
</compile_context>

<pallas_src>
import jax
import jax.numpy as jnp
from jax.experimental import pallas as pl
from jax.experimental.pallas import tpu as pltpu


# ---------------------------------------------------------------------------
# Kernel: row-wise softmax (matches F.softmax on a 2D tensor, i.e. dim=1)
# ---------------------------------------------------------------------------
def _row_softmax_kernel(x_ref, y_ref):
    x = x_ref[...]
    if x.dtype != jnp.float32:          # trace-time branch; no-op for f32 input
        x = x.astype(jnp.float32)
    m = jnp.max(x, axis=-1, keepdims=True)
    e = jnp.exp(x - m)
    s = jnp.sum(e, axis=-1, keepdims=True)
    # Reciprocal on the EUP slot instead of a VALU divide.  approx=False keeps
    # the result within ~1 ulp of the reference softmax (atol 1e-6 check).
    y_ref[...] = (e * pl.reciprocal(s, approx=False)).astype(y_ref.dtype)


def pallas_row_softmax(q0, *, max_block_rows=512):
    """Row-wise (dim=1) softmax of a 2D array via a single Pallas call.

    Rows are tiled in blocks of `max_block_rows` (a multiple of 8) when the
    input is large; D stays whole so the reduction is entirely within one
    lane-dense block.  Small inputs use one full-array block.
    """
    K, D = q0.shape
    if K % 8 == 0 and K > max_block_rows:
        bk = max_block_rows            # multiple of 8 by construction
    else:
        bk = K                         # full-array block (always legal)
    grid = (pl.cdiv(K, bk),)
    return pl.pallas_call(
        _row_softmax_kernel,
        out_shape=jax.ShapeDtypeStruct((K, D), q0.dtype),
        grid=grid,
        in_specs=[pl.BlockSpec((bk, D), lambda i: (i, 0))],
        out_specs=pl.BlockSpec((bk, D), lambda i: (i, 0)),
        compiler_params=pltpu.CompilerParams(
            dimension_semantics=("parallel",)),
    )(q0)


# ---------------------------------------------------------------------------
# Module
# ---------------------------------------------------------------------------
class GaussianDecoderOrig:
    """JAX/Pallas port of GaussianDecoder_orig."""

    def __init__(self, mu0, sigma0, q0):
        # Stored parameters exactly as in the PyTorch __init__ (layout glue
        # done once at init by XLA; see TODO(synk) above).
        self.mu = jnp.transpose(mu0, (1, 0))      # (D, K)
        self.sigma = jnp.transpose(sigma0, (1, 0))
        self._q0 = q0
        self._q = None                             # lazily materialized

    @property
    def q(self):
        # forward() never reads q, so the softmax kernel only runs if someone
        # actually asks for the parameter (review item: lazy q).
        if self._q is None:
            self._q = pallas_row_softmax(self._q0)
        return self._q

    def forward(self, r):
        # Pure parameter pass-through, exactly like the reference module.
        # No Pallas kernel, no DMA: the review's highest-value fix.
        del r
        return self.mu, self.sigma


# ---------------------------------------------------------------------------
# Main
# ---------------------------------------------------------------------------
if __name__ == "__main__":
    key = jax.random.PRNGKey(0)
    k_mu, k_sigma, k_q, k_r = jax.random.split(key, 4)

    K, D = 8, 32       # mu0/sigma0/q0: (K, D); stored mu/sigma: (D, K)
    B = 2              # batch for the (unused) input r

    mu0 = jax.random.normal(k_mu, (K, D), dtype=jnp.float32)
    sigma0 = jax.random.normal(k_sigma, (K, D), dtype=jnp.float32)
    q0 = jax.random.normal(k_q, (K, D), dtype=jnp.float32)
    r = jax.random.normal(k_r, (B, K), dtype=jnp.float32)

    decoder = GaussianDecoderOrig(mu0, sigma0, q0)
    mu_out, sigma_out = decoder.forward(r)
    q = decoder.q                      # triggers the lazy Pallas softmax
    jax.block_until_ready((mu_out, sigma_out, q))

    # Sanity checks against the reference semantics.
    assert mu_out.shape == (D, K) and sigma_out.shape == (D, K)
    assert jnp.allclose(mu_out, mu0.T) and jnp.allclose(sigma_out, sigma0.T)
    assert jnp.allclose(q, jax.nn.softmax(q0, axis=1), atol=1e-6)

    print("KERNEL_OK")
</pallas_src>

<mosaic_0001>
module attributes {stable_mosaic.version = 11 : i64} {
  func.func @_row_softmax_kernel(%arg0: i32, %arg1: memref<8x32xf32, #tpu.memory_space<vmem>>, %arg2: memref<8x32xf32, #tpu.memory_space<vmem>>) attributes {dimension_semantics = [#tpu.dimension_semantics<parallel>], iteration_bounds = array<i64: 1>, scalar_prefetch = 0 : i64, scratch_operands = 0 : i64, tpu.core_type = #tpu.core_type<tc>, window_params = [{transform_indices = @transform_0, window_bounds = array<i64: 8, 32>}, {transform_indices = @transform_1, window_bounds = array<i64: 8, 32>}]} {
    %c0 = arith.constant 0 : index
    %c0_0 = arith.constant 0 : index
    %0 = vector.load %arg1[%c0, %c0_0] : memref<8x32xf32, #tpu.memory_space<vmem>>, vector<8x32xf32>
    %cst = arith.constant dense<0xFF800000> : vector<8xf32>
    %1 = vector.multi_reduction <maximumf>, %0, %cst [1] : vector<8x32xf32> to vector<8xf32>
    %2 = vector.shape_cast %1 : vector<8xf32> to vector<8x1xf32>
    %3 = vector.broadcast %2 : vector<8x1xf32> to vector<8x32xf32>
    %4 = arith.subf %0, %3 : vector<8x32xf32>
    %5 = math.exp %4 : vector<8x32xf32>
    %cst_1 = arith.constant dense<0.000000e+00> : vector<8xf32>
    %6 = vector.multi_reduction <add>, %5, %cst_1 [1] : vector<8x32xf32> to vector<8xf32>
    %7 = vector.shape_cast %6 : vector<8xf32> to vector<8x1xf32>
    %8 = tpu.reciprocal %7 : vector<8x1xf32> -> vector<8x1xf32>
    %9 = vector.broadcast %8 : vector<8x1xf32> to vector<8x32xf32>
    %10 = arith.mulf %5, %9 : vector<8x32xf32>
    %c0_2 = arith.constant 0 : index
    %c0_3 = arith.constant 0 : index
    %11 = vector.load %arg2[%c0_2, %c0_3] : memref<8x32xf32, #tpu.memory_space<vmem>>, vector<8x32xf32>
    tpu.vector_store %arg2[%c0_2, %c0_3], %10 {strides = array<i32>} : memref<8x32xf32, #tpu.memory_space<vmem>>, vector<8x32xf32>,
    return
  }
  func.func @transform_0(%arg0: i32) -> (i32, i32) {
    %c0_i32 = arith.constant 0 : i32
    %c0_i32_0 = arith.constant 0 : i32
    return %arg0, %c0_i32 : i32, i32
  }
  func.func @transform_1(%arg0: i32) -> (i32, i32) {
    %c0_i32 = arith.constant 0 : i32
    %c0_i32_0 = arith.constant 0 : i32
    return %arg0, %c0_i32 : i32, i32
  }
}

</mosaic_0001>

<llo_original>
// kernel: tpu_custom_call.1
$region0: #{tpu_custom_call.1}
  #allocation0 [shape = 'u32[]', space=smem, size = 0x4, offset = 0x4, fixed_abs, tag = 'smem constant byte address 0x4 - core index']
  #allocation1 [shape = 'u32[72,128]{1,0:T(1,128)}', space=vmem, size = 0x9000, scoped, tag = 'internal scratch']
  %s0 = inlined_call_operand.hbm [shape: f32[8,32], index: 0, kind: input, shape index: {}]
  %s1 = inlined_call_operand.hbm [shape: f32[8,32], index: 1, kind: output, shape index: {}]
  %s2 = sld [smem:[#allocation0]]
  $region18: #{tpu_custom_call.1} parent=0
    _
  %s4 = ssub.s32 1, %s2
  %s5 = scalar_select 0, %s4, %s2
  $region1: #{tpu_custom_call.1} parent=0
    #allocation2 [shape = 'u8[4096]{0}', space=vmem, size = 0x1000, scoped, tag = 'input window, operand 0, single buffered']
    #allocation3 [shape = 's32[1]{0}', space=sflag, size = 0x4, scoped, tag = 'scoped memory for tpu_custom_call.1']
    #allocation4 [shape = 's32[1]{0}', space=sflag, size = 0x4, scoped, tag = 'scoped memory for tpu_custom_call.1']
    #allocation5 [shape = 'u8[4096]{0}', space=vmem, size = 0x1000, scoped, tag = 'output window, operand 0, single buffered']
    %6 = vsyncpa [#allocation3], 0
    %7 = vsyncpa [#allocation4], 0
    // Predicated region
    $region2: #{tpu_custom_call.1} parent=1 // pred_check
      _
    $region3: #{tpu_custom_call.1} parent=1 // pred_check_branch
      %9 = sbr.rel (0) target = $region5
    $region4: #{tpu_custom_call.1} parent=1 // pred_region
      %11 = vsyncadd [#allocation3], 0
      %s13 = sshll.u32 %s0, 4
      %s14 = int_to_ptr.hbm [resolvable:$true] %s13
      %s15 = sshll.u32 [#allocation2], 4
      %s16 = int_to_ptr.vmem [resolvable:$true] %s15
      %18 = dma.hbm_to_vmem [thread:$0]  %s14, 128, %s16, [#allocation3]
    $region5: #{tpu_custom_call.1} parent=1 // pred_fallthru
      _
    // Predicated region
    $region6: #{tpu_custom_call.1} parent=1 // pred_check
      _
    $region7: #{tpu_custom_call.1} parent=1 // pred_check_branch
      %20 = sbr.rel (0) target = $region9
    $region8: #{tpu_custom_call.1} parent=1 // pred_region
      %22 = dma.done [#allocation3], 128
    $region9: #{tpu_custom_call.1} parent=1 // pred_fallthru
      _
    %v23 = vld [vmem:[#allocation2] sm:$0xff]
    %vm24 = vcmask 261120
    %v25 = vsel %vm24, %v23, -inf
    %26 = vmax.xlane.f32.xlu0 %v25
    %v27 = vpop.xlane.xlu0 %26
    %v28 = vsub.f32 %v23, %v27
    %v29 = vmul.f32 %v28, 1.442695
    %v30 = vpow.pop %v29
    %v31 = vsel %vm24, %v30, 0.0
    %32 = vadd.xlane.f32.xlu0 %v31
    %v33 = vpop.xlane.xlu0 %32
    %v34 = vrcp.pop %v33
    %v35 = vmul.f32 %v33, %v34
    %v36 = vsub.f32 1.0, %v35
    %v37 = vmul.f32 %v34, %v36
    %v38 = vadd.f32 %v34, %v37
    %vm39 = vweird.f32 %v33
    %vm40 = vweird.f32 %v34
    %vm41 = vmor %vm39, %vm40
    %v42 = vsel %vm41, %v34, %v38
    %v43 = vand.u32 2147483647, %v33
    %vm44 = vcmp.eq.f32.partialorder %v43, 8.507059e+37
    %v45 = vand.u32 %v33, 2147483648
    %v46 = vor.u32 1.1754944e-38, %v45
    %v47 = vsel %vm44, %v46, %v42
    %v48 = vmul.f32 %v30, %v47
    %49 = vst.msk [vmem:[#allocation5] sm:$0xff] %vm24, %v48
    // Predicated region
    $region10: #{tpu_custom_call.1} parent=1 // pred_check
      _
    $region11: #{tpu_custom_call.1} parent=1 // pred_check_branch
      %51 = sbr.rel (0) target = $region13
    $region12: #{tpu_custom_call.1} parent=1 // pred_region
      %53 = vsyncadd [#allocation4], 0
      %s55 = sshll.u32 [#allocation5], 4
      %s56 = int_to_ptr.vmem [resolvable:$true] %s55
      %s57 = sshll.u32 %s1, 4
      %s58 = int_to_ptr.hbm [resolvable:$true] %s57
      %60 = dma.vmem_to_hbm [thread:$0]  %s56, 128, %s58, [#allocation4]
    $region13: #{tpu_custom_call.1} parent=1 // pred_fallthru
      _
    // Predicated region
    $region14: #{tpu_custom_call.1} parent=1 // pred_check
      _
    $region15: #{tpu_custom_call.1} parent=1 // pred_check_branch
      %62 = sbr.rel (0) target = $region17
    $region16: #{tpu_custom_call.1} parent=1 // pred_region
      %64 = dma.done [#allocation4], 128
    $region17: #{tpu_custom_call.1} parent=1 // pred_fallthru
      _
    %65 = vsyncpa [#allocation3], 1
    %66 = vsyncpa [#allocation4], 1

</llo_original>
